<compile_context>
chip_gen: v6e
topology: v6e:2x2x1
jax: 0.10.0
libtpu: 0.0.40
codegen_flags: <defaults>
</compile_context>

<pallas_src>
import jax
import jax.numpy as jnp
import numpy as np
from jax.experimental import pallas as pl
from jax.experimental.pallas import tpu as pltpu

LATENT_SIZE = 13
D0 = LATENT_SIZE + 3          # 16 : latent + xyz
HIDDEN = [32, 32, 32]
H0 = HIDDEN[0]                # 32 : lin0 out
H1 = HIDDEN[1] - D0           # 16 : lin1 out (= dims[2] - dims[0], layer 2 in latent_in)
H2 = HIDDEN[2]                # 32 : lin2 out
D_OUT = 1 + 2                 # 3
# dims = [16, 32, 32, 32, 3]


def decoder_kernel(x_ref,
                   w0f_ref, b0_ref,
                   w1_ref, b1_ref,
                   w2a_ref, b2_ref,
                   w3_ref, b3_ref,
                   o_ref):
    cdt = w0f_ref.dtype                    # matmul-input dtype (bf16 by default)
    x = x_ref[...].astype(cdt)             # (D0, TN) — batch points on lanes

    # Fused layer 0 + layer-2 x-contribution: (H0+H2, D0) @ (D0, TN).
    # Rows [:H0]  = w0  @ x  (layer-0 pre-activation, before bias)
    # Rows [H0:]  = w2b @ x  (the "cat([h, input])" x-half of layer 2)
    fused = jnp.dot(w0f_ref[...], x, preferred_element_type=jnp.float32)   # (64, TN) f32
    h0 = jnp.maximum(fused[:H0, :] + b0_ref[...], 0.0)                     # (32, TN) f32
    x_contrib = fused[H0:, :]                                              # (32, TN) f32

    # layer 1: Linear(32 -> 16) + ReLU
    h1 = jnp.dot(w1_ref[...], h0.astype(cdt),
                 preferred_element_type=jnp.float32) + b1_ref[...]
    h1 = jnp.maximum(h1, 0.0)                                              # (16, TN)

    # layer 2 (latent_in): torch.cat([h, input], 1) @ w2.T folded into
    # w2a @ h1 + (w2b @ x); no in-kernel concat.
    h2 = jnp.dot(w2a_ref[...], h1.astype(cdt),
                 preferred_element_type=jnp.float32) + x_contrib + b2_ref[...]
    h2 = jnp.maximum(h2, 0.0)                                              # (32, TN)

    # layer 3 (last linear): Linear(32 -> 3), no ReLU / no LayerNorm
    h3 = jnp.dot(w3_ref[...], h2.astype(cdt),
                 preferred_element_type=jnp.float32) + b3_ref[...]

    # final self.th tanh; output slab is (D_OUT, TN) -> lane-dense stores
    o_ref[...] = jnp.tanh(h3).astype(o_ref.dtype)

    # TODO(synk): dropout / latent_dropout are identity in eval mode
    # (training=False) and are therefore not materialized in the kernel.


def decoder_forward(x_t, params, *, tile_n=512, compute_dtype=jnp.bfloat16):
    """x_t: (D0, N) feature-major (any float dtype).  Returns (D_OUT, N) fp32.

    x is streamed at its incoming dtype and cast to `compute_dtype` in-kernel;
    pass bf16 x_t to also halve the HBM input stream.
    """
    din, N = x_t.shape
    assert din == D0
    assert tile_n % 128 == 0, "lane tile must be a multiple of 128"

    w0, b0, w1, b1, w2, b2, w3, b3 = params

    # Fold the latent_in concat into the weights.  cat order is [h1 | x], so
    # w2[:, :H1] acts on h1 and w2[:, H1:] acts on x; the x-part is stacked
    # under w0 so layer 0 computes both in a single MXU push.
    w2a = w2[:, :H1]                                     # (32, 16)
    w2b = w2[:, H1:]                                     # (32, 16)
    w0f = jnp.concatenate([w0, w2b], axis=0)             # (64, 16)

    ws = tuple(w.astype(compute_dtype) for w in (w0f, w1, w2a, w3))
    bs = (b0, b1, b2, b3)                                # biases stay fp32

    def full_spec(a):
        return pl.BlockSpec(a.shape, lambda i: (0, 0))   # weights resident

    x_spec = pl.BlockSpec((D0, tile_n), lambda i: (0, i))  # default double buffer
    in_specs = [x_spec]
    for w, b in zip(ws, bs):
        in_specs += [full_spec(w), full_spec(b)]

    grid = (pl.cdiv(N, tile_n),)     # ragged last block: inputs/outputs masked by Pallas

    out_t = pl.pallas_call(
        decoder_kernel,
        out_shape=jax.ShapeDtypeStruct((D_OUT, N), jnp.float32),
        grid=grid,
        in_specs=in_specs,
        out_specs=pl.BlockSpec((D_OUT, tile_n), lambda i: (0, i)),
        compiler_params=pltpu.CompilerParams(dimension_semantics=("parallel",)),
    )(x_t, ws[0], bs[0], ws[1], bs[1], ws[2], bs[2], ws[3], bs[3])

    return out_t                                         # (D_OUT, N)


def _wn_linear(key, din, dout):
    """Deterministic weight-norm linear; returns effective (dout, din) W and (dout, 1) b."""
    kv, kg, kb = jax.random.split(key, 3)
    v = jax.random.normal(kv, (dout, din), jnp.float32) * 0.1
    g = jax.random.uniform(kg, (dout, 1), jnp.float32, minval=0.5, maxval=1.5)
    b = jax.random.normal(kb, (dout,), jnp.float32) * 0.01
    w = g * v / jnp.linalg.norm(v, axis=1, keepdims=True)   # nn.utils.weight_norm, dim=0
    return w, b.reshape(dout, 1)


def init_params(key):
    k0, k1, k2, k3 = jax.random.split(key, 4)
    w0, b0 = _wn_linear(k0, D0, H0)          # lin0: 16 -> 32
    w1, b1 = _wn_linear(k1, H0, H1)          # lin1: 32 -> 16
    w2, b2 = _wn_linear(k2, H1 + D0, H2)     # lin2: 32 -> 32 (cat([h, input]))
    w3, b3 = _wn_linear(k3, H2, D_OUT)       # lin3: 32 -> 3
    return (w0, b0, w1, b1, w2, b2, w3, b3)


def decoder_ref(x, params):
    """Pure-JAX reference matching the PyTorch forward (eval mode); x: (N, D0)."""
    w0, b0, w1, b1, w2, b2, w3, b3 = params
    h = jax.nn.relu(x @ w0.T + b0.T)
    h = jax.nn.relu(h @ w1.T + b1.T)
    h = jax.nn.relu(jnp.concatenate([h, x], axis=1) @ w2.T + b2.T)   # latent_in layer
    h = h @ w3.T + b3.T
    return jnp.tanh(h)


if __name__ == "__main__":
    key = jax.random.PRNGKey(0)
    kx, kp = jax.random.split(key)

    N = 2048                                             # number of query points
    # Feature-major input: rows = [latent(13) | xyz(3)], points on lanes.
    x_t = jax.random.normal(kx, (D0, N), jnp.float32)
    params = init_params(kp)

    ref = decoder_ref(x_t.T, params)                     # reference in (N, D0) layout

    # Primary path: bf16 matmul inputs, f32 accumulation + epilogue.
    out_t = decoder_forward(x_t, params, tile_n=512)
    out_t = jax.block_until_ready(out_t)
    assert out_t.shape == (D_OUT, N)
    np.testing.assert_allclose(np.asarray(out_t).T, np.asarray(ref), rtol=0.0, atol=5e-2)

    # f32 path: tight check of the structural transform (concat folding etc.).
    # Tolerance slightly loosened vs. 1e-5 in case Mosaic's default f32 dot
    # precision changes across generations.
    out_f32 = decoder_forward(x_t, params, tile_n=512, compute_dtype=jnp.float32)
    out_f32 = jax.block_until_ready(out_f32)
    np.testing.assert_allclose(np.asarray(out_f32).T, np.asarray(ref), rtol=1e-4, atol=1e-4)

    print("KERNEL_OK")
</pallas_src>

<mosaic_0001>
module attributes {stable_mosaic.version = 11 : i64} {
  func.func @decoder_kernel(%arg0: i32, %arg1: memref<16x512xf32, #tpu.memory_space<vmem>>, %arg2: memref<64x16xbf16, #tpu.memory_space<vmem>>, %arg3: memref<32x1xf32, #tpu.memory_space<vmem>>, %arg4: memref<16x32xbf16, #tpu.memory_space<vmem>>, %arg5: memref<16x1xf32, #tpu.memory_space<vmem>>, %arg6: memref<32x16xbf16, #tpu.memory_space<vmem>>, %arg7: memref<32x1xf32, #tpu.memory_space<vmem>>, %arg8: memref<3x32xbf16, #tpu.memory_space<vmem>>, %arg9: memref<3x1xf32, #tpu.memory_space<vmem>>, %arg10: memref<3x512xf32, #tpu.memory_space<vmem>>) attributes {dimension_semantics = [#tpu.dimension_semantics<parallel>], iteration_bounds = array<i64: 4>, scalar_prefetch = 0 : i64, scratch_operands = 0 : i64, tpu.core_type = #tpu.core_type<tc>, window_params = [{transform_indices = @transform_0, window_bounds = array<i64: 16, 512>}, {pipeline_mode = #tpu.pipeline_mode<synchronous>, transform_indices = @transform_1, window_bounds = array<i64: 64, 16>}, {pipeline_mode = #tpu.pipeline_mode<synchronous>, transform_indices = @transform_2, window_bounds = array<i64: 32, 1>}, {pipeline_mode = #tpu.pipeline_mode<synchronous>, transform_indices = @transform_3, window_bounds = array<i64: 16, 32>}, {pipeline_mode = #tpu.pipeline_mode<synchronous>, transform_indices = @transform_4, window_bounds = array<i64: 16, 1>}, {pipeline_mode = #tpu.pipeline_mode<synchronous>, transform_indices = @transform_5, window_bounds = array<i64: 32, 16>}, {pipeline_mode = #tpu.pipeline_mode<synchronous>, transform_indices = @transform_6, window_bounds = array<i64: 32, 1>}, {pipeline_mode = #tpu.pipeline_mode<synchronous>, transform_indices = @transform_7, window_bounds = array<i64: 3, 32>}, {pipeline_mode = #tpu.pipeline_mode<synchronous>, transform_indices = @transform_8, window_bounds = array<i64: 3, 1>}, {transform_indices = @transform_9, window_bounds = array<i64: 3, 512>}]} {
    %c0 = arith.constant 0 : index
    %c0_0 = arith.constant 0 : index
    %0 = vector.load %arg1[%c0, %c0_0] : memref<16x512xf32, #tpu.memory_space<vmem>>, vector<16x512xf32>
    %1 = arith.truncf %0 : vector<16x512xf32> to vector<16x512xbf16>
    %c0_1 = arith.constant 0 : index
    %c0_2 = arith.constant 0 : index
    %2 = vector.load %arg2[%c0_1, %c0_2] : memref<64x16xbf16, #tpu.memory_space<vmem>>, vector<64x16xbf16>
    %cst = arith.constant dense<0.000000e+00> : vector<64x512xf32>
    %3 = tpu.matmul %2, %1, %cst {dimension_numbers = #tpu.dot_dimension_numbers<[1], [0], [0], [1], [0, 0, 1, 1], [], []>} : vector<64x16xbf16>, vector<16x512xbf16>, vector<64x512xf32> -> vector<64x512xf32>
    %4 = vector.extract_strided_slice %3 {offsets = [0, 0], sizes = [32, 512], strides = [1, 1]} : vector<64x512xf32> to vector<32x512xf32>
    %c0_3 = arith.constant 0 : index
    %c0_4 = arith.constant 0 : index
    %5 = vector.load %arg3[%c0_3, %c0_4] : memref<32x1xf32, #tpu.memory_space<vmem>>, vector<32x1xf32>
    %6 = vector.broadcast %5 : vector<32x1xf32> to vector<32x512xf32>
    %7 = arith.addf %4, %6 : vector<32x512xf32>
    %cst_5 = arith.constant 0.000000e+00 : f32
    %8 = vector.broadcast %cst_5 : f32 to vector<32x512xf32>
    %9 = arith.maximumf %7, %8 : vector<32x512xf32>
    %10 = vector.extract_strided_slice %3 {offsets = [32, 0], sizes = [32, 512], strides = [1, 1]} : vector<64x512xf32> to vector<32x512xf32>
    %c0_6 = arith.constant 0 : index
    %c0_7 = arith.constant 0 : index
    %11 = vector.load %arg4[%c0_6, %c0_7] : memref<16x32xbf16, #tpu.memory_space<vmem>>, vector<16x32xbf16>
    %12 = arith.truncf %9 : vector<32x512xf32> to vector<32x512xbf16>
    %cst_8 = arith.constant dense<0.000000e+00> : vector<16x512xf32>
    %13 = tpu.matmul %11, %12, %cst_8 {dimension_numbers = #tpu.dot_dimension_numbers<[1], [0], [0], [1], [0, 0, 1, 1], [], []>} : vector<16x32xbf16>, vector<32x512xbf16>, vector<16x512xf32> -> vector<16x512xf32>
    %c0_9 = arith.constant 0 : index
    %c0_10 = arith.constant 0 : index
    %14 = vector.load %arg5[%c0_9, %c0_10] : memref<16x1xf32, #tpu.memory_space<vmem>>, vector<16x1xf32>
    %15 = vector.broadcast %14 : vector<16x1xf32> to vector<16x512xf32>
    %16 = arith.addf %13, %15 : vector<16x512xf32>
    %cst_11 = arith.constant 0.000000e+00 : f32
    %17 = vector.broadcast %cst_11 : f32 to vector<16x512xf32>
    %18 = arith.maximumf %16, %17 : vector<16x512xf32>
    %c0_12 = arith.constant 0 : index
    %c0_13 = arith.constant 0 : index
    %19 = vector.load %arg6[%c0_12, %c0_13] : memref<32x16xbf16, #tpu.memory_space<vmem>>, vector<32x16xbf16>
    %20 = arith.truncf %18 : vector<16x512xf32> to vector<16x512xbf16>
    %cst_14 = arith.constant dense<0.000000e+00> : vector<32x512xf32>
    %21 = tpu.matmul %19, %20, %cst_14 {dimension_numbers = #tpu.dot_dimension_numbers<[1], [0], [0], [1], [0, 0, 1, 1], [], []>} : vector<32x16xbf16>, vector<16x512xbf16>, vector<32x512xf32> -> vector<32x512xf32>
    %22 = arith.addf %21, %10 : vector<32x512xf32>
    %c0_15 = arith.constant 0 : index
    %c0_16 = arith.constant 0 : index
    %23 = vector.load %arg7[%c0_15, %c0_16] : memref<32x1xf32, #tpu.memory_space<vmem>>, vector<32x1xf32>
    %24 = vector.broadcast %23 : vector<32x1xf32> to vector<32x512xf32>
    %25 = arith.addf %22, %24 : vector<32x512xf32>
    %cst_17 = arith.constant 0.000000e+00 : f32
    %26 = vector.broadcast %cst_17 : f32 to vector<32x512xf32>
    %27 = arith.maximumf %25, %26 : vector<32x512xf32>
    %c0_18 = arith.constant 0 : index
    %c0_19 = arith.constant 0 : index
    %28 = vector.load %arg8[%c0_18, %c0_19] : memref<3x32xbf16, #tpu.memory_space<vmem>>, vector<3x32xbf16>
    %29 = arith.truncf %27 : vector<32x512xf32> to vector<32x512xbf16>
    %cst_20 = arith.constant dense<0.000000e+00> : vector<3x512xf32>
    %30 = tpu.matmul %28, %29, %cst_20 {dimension_numbers = #tpu.dot_dimension_numbers<[1], [0], [0], [1], [0, 0, 1, 1], [], []>} : vector<3x32xbf16>, vector<32x512xbf16>, vector<3x512xf32> -> vector<3x512xf32>
    %c0_21 = arith.constant 0 : index
    %c0_22 = arith.constant 0 : index
    %31 = vector.load %arg9[%c0_21, %c0_22] : memref<3x1xf32, #tpu.memory_space<vmem>>, vector<3x1xf32>
    %32 = vector.broadcast %31 : vector<3x1xf32> to vector<3x512xf32>
    %33 = arith.addf %30, %32 : vector<3x512xf32>
    %34 = math.tanh %33 : vector<3x512xf32>
    %c0_23 = arith.constant 0 : index
    %c0_24 = arith.constant 0 : index
    %35 = vector.load %arg10[%c0_23, %c0_24] : memref<3x512xf32, #tpu.memory_space<vmem>>, vector<3x512xf32>
    tpu.vector_store %arg10[%c0_23, %c0_24], %34 {strides = array<i32>} : memref<3x512xf32, #tpu.memory_space<vmem>>, vector<3x512xf32>,
    return
  }
  func.func @transform_0(%arg0: i32) -> (i32, i32) {
    %c0_i32 = arith.constant 0 : i32
    %c0_i32_0 = arith.constant 0 : i32
    return %c0_i32, %arg0 : i32, i32
  }
  func.func @transform_1(%arg0: i32) -> (i32, i32) {
    %c0_i32 = arith.constant 0 : i32
    %c0_i32_0 = arith.constant 0 : i32
    %c0_i32_1 = arith.constant 0 : i32
    return %c0_i32, %c0_i32_0 : i32, i32
  }
  func.func @transform_2(%arg0: i32) -> (i32, i32) {
    %c0_i32 = arith.constant 0 : i32
    %c0_i32_0 = arith.constant 0 : i32
    %c0_i32_1 = arith.constant 0 : i32
    return %c0_i32, %c0_i32_0 : i32, i32
  }
  func.func @transform_3(%arg0: i32) -> (i32, i32) {
    %c0_i32 = arith.constant 0 : i32
    %c0_i32_0 = arith.constant 0 : i32
    %c0_i32_1 = arith.constant 0 : i32
    return %c0_i32, %c0_i32_0 : i32, i32
  }
  func.func @transform_4(%arg0: i32) -> (i32, i32) {
    %c0_i32 = arith.constant 0 : i32
    %c0_i32_0 = arith.constant 0 : i32
    %c0_i32_1 = arith.constant 0 : i32
    return %c0_i32, %c0_i32_0 : i32, i32
  }
  func.func @transform_5(%arg0: i32) -> (i32, i32) {
    %c0_i32 = arith.constant 0 : i32
    %c0_i32_0 = arith.constant 0 : i32
    %c0_i32_1 = arith.constant 0 : i32
    return %c0_i32, %c0_i32_0 : i32, i32
  }
  func.func @transform_6(%arg0: i32) -> (i32, i32) {
    %c0_i32 = arith.constant 0 : i32
    %c0_i32_0 = arith.constant 0 : i32
    %c0_i32_1 = arith.constant 0 : i32
    return %c0_i32, %c0_i32_0 : i32, i32
  }
  func.func @transform_7(%arg0: i32) -> (i32, i32) {
    %c0_i32 = arith.constant 0 : i32
    %c0_i32_0 = arith.constant 0 : i32
    %c0_i32_1 = arith.constant 0 : i32
    return %c0_i32, %c0_i32_0 : i32, i32
  }
  func.func @transform_8(%arg0: i32) -> (i32, i32) {
    %c0_i32 = arith.constant 0 : i32
    %c0_i32_0 = arith.constant 0 : i32
    %c0_i32_1 = arith.constant 0 : i32
    return %c0_i32, %c0_i32_0 : i32, i32
  }
  func.func @transform_9(%arg0: i32) -> (i32, i32) {
    %c0_i32 = arith.constant 0 : i32
    %c0_i32_0 = arith.constant 0 : i32
    return %c0_i32, %arg0 : i32, i32
  }
}

</mosaic_0001>

<llo_original>
// kernel: tpu_custom_call.1
$region0: #{tpu_custom_call.1}
  #allocation0 [shape = 'u32[]', space=smem, size = 0x4, offset = 0x4, fixed_abs, tag = 'smem constant byte address 0x4 - core index']
  #allocation1 [shape = 'u32[144,128]{1,0:T(1,128)}', space=vmem, size = 0x12000, scoped, tag = 'internal scratch']
  %s0 = inlined_call_operand.hbm [shape: f32[16,2048], index: 0, kind: input, shape index: {}]
  %s1 = inlined_call_operand.vmem [shape: bf16[64,16], index: 1, kind: input, shape index: {}]
  %s2 = inlined_call_operand.vmem [shape: f32[32,1], index: 2, kind: input, shape index: {}]
  %s3 = inlined_call_operand.vmem [shape: bf16[16,32], index: 3, kind: input, shape index: {}]
  %s4 = inlined_call_operand.vmem [shape: f32[16,1], index: 4, kind: input, shape index: {}]
  %s5 = inlined_call_operand.vmem [shape: bf16[32,16], index: 5, kind: input, shape index: {}]
  %s6 = inlined_call_operand.vmem [shape: f32[32,1], index: 6, kind: input, shape index: {}]
  %s7 = inlined_call_operand.vmem [shape: bf16[3,32], index: 7, kind: input, shape index: {}]
  %s8 = inlined_call_operand.vmem [shape: f32[3,1], index: 8, kind: input, shape index: {}]
  %s9 = inlined_call_operand.hbm [shape: f32[3,2048], index: 9, kind: output, shape index: {}]
  %s10 = sld [smem:[#allocation0]]
  $region73: #{tpu_custom_call.1} parent=0
    _
  %s12 = ssub.s32 1, %s10
  %s13 = scalar_select 0, %s12, %s10
  $region1: #{tpu_custom_call.1} parent=0
    #allocation2 [shape = 'u8[65536]{0}', space=vmem, size = 0x10000, scoped, tag = 'input window, operand 0']
    #allocation3 [shape = 's32[2]{0}', space=sflag, size = 0x8, scoped, tag = 'scoped memory for tpu_custom_call.1']
    #allocation4 [shape = 's32[2]{0}', space=sflag, size = 0x8, scoped, tag = 'scoped memory for tpu_custom_call.1']
    #allocation5 [shape = 'u8[16384]{0}', space=vmem, size = 0x4000, scoped, tag = 'output window, operand 0']
    %14 = vsyncpa [#allocation3], 0
    %s15 = scalar_lea.sflag [#allocation3], 1
    %16 = vsyncpa %s15, 0
    %17 = vsyncpa [#allocation4], 0
    %s18 = scalar_lea.sflag [#allocation4], 1
    %19 = vsyncpa %s18, 0
    loop: start=0, step=1, limit=6
    $region2: #{tpu_custom_call.1} parent=1 // loop_pre_header
      _
    $region3: #{tpu_custom_call.1} parent=1 // loop_header
      %s21 = sphi 0, %s25
      %p22 = scmp.ge.s32.totalorder %s21, 6
      %s31 = sphi 0, %s33
      %s34 = sphi 0, %s31
      %s35 = sphi 0, %s34
      %s51 = sphi 0, %s35
      %s55 = sphi 0, %s55
      %s57 = sphi 0, %s55
      %s58 = sphi 0, %s57
      %s72 = sphi 0, %s58
      %s76 = sphi 0, %s76
      %s78 = sphi 0, %s76
      %s79 = sphi 0, %s78
      %s93 = sphi 0, %s79
      %s97 = sphi 0, %s97
      %s99 = sphi 0, %s97
      %s100 = sphi 0, %s99
      %s114 = sphi 0, %s100
      %s118 = sphi 0, %s118
      %s120 = sphi 0, %s118
      %s121 = sphi 0, %s120
      %s135 = sphi 0, %s121
      %s139 = sphi 0, %s139
      %s141 = sphi 0, %s139
      %s142 = sphi 0, %s141
      %s156 = sphi 0, %s142
      %s160 = sphi 0, %s160
      %s162 = sphi 0, %s160
      %s163 = sphi 0, %s162
      %s177 = sphi 0, %s163
      %s181 = sphi 0, %s181
      %s183 = sphi 0, %s181
      %s184 = sphi 0, %s183
      %s198 = sphi 0, %s184
      %s202 = sphi 0, %s202
      %s204 = sphi 0, %s202
      %s205 = sphi 0, %s204
      %s219 = sphi 0, %s205
      %s225 = sphi 0, %s227
      %s228 = sphi 0, %s225
      %s229 = sphi 0, %s228
      %s245 = sphi 0, %s229
    $region4: #{tpu_custom_call.1} parent=1 // loop_header_branch
      %24 = sbr.rel (%p22) target = $region8
    $region5: #{tpu_custom_call.1} parent=1 // loop_body
      %s26 = ssub.s32 %s21, 1
      %s27 = ssub.s32 %s21, 2
      %s28 = sadd.s32 %s21, 1
      %s29 = ssub.s32 %s21, %s28
      %p30 = scmp.eq.s32.totalorder %s29, 0
      %s32 = sadd.s32 %s31, 1
      %s33 = scalar_select %p30, %s31, %s32
      %p36 = pneg %p30
      %p37 = scmp.eq.s32.totalorder %s21, 3
      %p38 = por %p36, %p37
      %p39 = scmp.ne.s32.totalorder %s31, %s34
      %p40 = scmp.eq.s32.totalorder %s21, 0
      %p41 = por %p39, %p40
      %p42 = scmp.ne.s32.totalorder %s31, %s34
      %p43 = scmp.eq.s32.totalorder %s26, 3
      %p44 = por %p42, %p43
      %p45 = scmp.ne.s32.totalorder %s34, %s35
      %p46 = scmp.eq.s32.totalorder %s26, 0
      %p47 = por %p45, %p46
      %p48 = scmp.ne.s32.totalorder %s34, %s35
      %p49 = scmp.eq.s32.totalorder %s27, 3
      %p50 = por %p48, %p49
      %p52 = scmp.ne.s32.totalorder %s35, %s51
      %p53 = scmp.eq.s32.totalorder %s27, 0
      %p54 = por %p52, %p53
      %s56 = sadd.s32 %s55, 1
      %p59 = scmp.eq.s32.totalorder %s21, 3
      %p60 = scmp.ne.s32.totalorder %s55, %s57
      %p61 = scmp.eq.s32.totalorder %s21, 0
      %p62 = por %p60, %p61
      %p63 = scmp.ne.s32.totalorder %s55, %s57
      %p64 = scmp.eq.s32.totalorder %s26, 3
      %p65 = por %p63, %p64
      %p66 = scmp.ne.s32.totalorder %s57, %s58
      %p67 = scmp.eq.s32.totalorder %s26, 0
      %p68 = por %p66, %p67
      %p69 = scmp.ne.s32.totalorder %s57, %s58
      %p70 = scmp.eq.s32.totalorder %s27, 3
      %p71 = por %p69, %p70
      %p73 = scmp.ne.s32.totalorder %s58, %s72
      %p74 = scmp.eq.s32.totalorder %s27, 0
      %p75 = por %p73, %p74
      %s77 = sadd.s32 %s76, 1
      %p80 = scmp.eq.s32.totalorder %s21, 3
      %p81 = scmp.ne.s32.totalorder %s76, %s78
      %p82 = scmp.eq.s32.totalorder %s21, 0
      %p83 = por %p81, %p82
      %p84 = scmp.ne.s32.totalorder %s76, %s78
      %p85 = scmp.eq.s32.totalorder %s26, 3
      %p86 = por %p84, %p85
      %p87 = scmp.ne.s32.totalorder %s78, %s79
      %p88 = scmp.eq.s32.totalorder %s26, 0
      %p89 = por %p87, %p88
      %p90 = scmp.ne.s32.totalorder %s78, %s79
      %p91 = scmp.eq.s32.totalorder %s27, 3
      %p92 = por %p90, %p91
      %p94 = scmp.ne.s32.totalorder %s79, %s93
      %p95 = scmp.eq.s32.totalorder %s27, 0
      %p96 = por %p94, %p95
      %s98 = sadd.s32 %s97, 1
      %p101 = scmp.eq.s32.totalorder %s21, 3
      %p102 = scmp.ne.s32.totalorder %s97, %s99
      %p103 = scmp.eq.s32.totalorder %s21, 0
      %p104 = por %p102, %p103
      %p105 = scmp.ne.s32.totalorder %s97, %s99
      %p106 = scmp.eq.s32.totalorder %s26, 3
      %p107 = por %p105, %p106
      %p108 = scmp.ne.s32.totalorder %s99, %s100
      %p109 = scmp.eq.s32.totalorder %s26, 0
      %p110 = por %p108, %p109
      %p111 = scmp.ne.s32.totalorder %s99, %s100
      %p112 = scmp.eq.s32.totalorder %s27, 3
      %p113 = por %p111, %p112
      %p115 = scmp.ne.s32.totalorder %s100, %s114
      %p116 = scmp.eq.s32.totalorder %s27, 0
      %p117 = por %p115, %p116
      %s119 = sadd.s32 %s118, 1
      %p122 = scmp.eq.s32.totalorder %s21, 3
      %p123 = scmp.ne.s32.totalorder %s118, %s120
      %p124 = scmp.eq.s32.totalorder %s21, 0
      %p125 = por %p123, %p124
      %p126 = scmp.ne.s32.totalorder %s118, %s120
      %p127 = scmp.eq.s32.totalorder %s26, 3
      %p128 = por %p126, %p127
      %p129 = scmp.ne.s32.totalorder %s120, %s121
      %p130 = scmp.eq.s32.totalorder %s26, 0
      %p131 = por %p129, %p130
      %p132 = scmp.ne.s32.totalorder %s120, %s121
      %p133 = scmp.eq.s32.totalorder %s27, 3
      %p134 = por %p132, %p133
      %p136 = scmp.ne.s32.totalorder %s121, %s135
      %p137 = scmp.eq.s32.totalorder %s27, 0
      %p138 = por %p136, %p137
      %s140 = sadd.s32 %s139, 1
      %p143 = scmp.eq.s32.totalorder %s21, 3
      %p144 = scmp.ne.s32.totalorder %s139, %s141
      %p145 = scmp.eq.s32.totalorder %s21, 0
      %p146 = por %p144, %p145
      %p147 = scmp.ne.s32.totalorder %s139, %s141
      %p148 = scmp.eq.s32.totalorder %s26, 3
      %p149 = por %p147, %p148
      %p150 = scmp.ne.s32.totalorder %s141, %s142
      %p151 = scmp.eq.s32.totalorder %s26, 0
      %p152 = por %p150, %p151
      %p153 = scmp.ne.s32.totalorder %s141, %s142
      %p154 = scmp.eq.s32.totalorder %s27, 3
      %p155 = por %p153, %p154
      %p157 = scmp.ne.s32.totalorder %s142, %s156
      %p158 = scmp.eq.s32.totalorder %s27, 0
      %p159 = por %p157, %p158
      %s161 = sadd.s32 %s160, 1
      %p164 = scmp.eq.s32.totalorder %s21, 3
      %p165 = scmp.ne.s32.totalorder %s160, %s162
      %p166 = scmp.eq.s32.totalorder %s21, 0
      %p167 = por %p165, %p166
      %p168 = scmp.ne.s32.totalorder %s160, %s162
      %p169 = scmp.eq.s32.totalorder %s26, 3
      %p170 = por %p168, %p169
      %p171 = scmp.ne.s32.totalorder %s162, %s163
      %p172 = scmp.eq.s32.totalorder %s26, 0
      %p173 = por %p171, %p172
      %p174 = scmp.ne.s32.totalorder %s162, %s163
      %p175 = scmp.eq.s32.totalorder %s27, 3
      %p176 = por %p174, %p175
      %p178 = scmp.ne.s32.totalorder %s163, %s177
      %p179 = scmp.eq.s32.totalorder %s27, 0
      %p180 = por %p178, %p179
      %s182 = sadd.s32 %s181, 1
      %p185 = scmp.eq.s32.totalorder %s21, 3
      %p186 = scmp.ne.s32.totalorder %s181, %s183
      %p187 = scmp.eq.s32.totalorder %s21, 0
      %p188 = por %p186, %p187
      %p189 = scmp.ne.s32.totalorder %s181, %s183
      %p190 = scmp.eq.s32.totalorder %s26, 3
      %p191 = por %p189, %p190
      %p192 = scmp.ne.s32.totalorder %s183, %s184
      %p193 = scmp.eq.s32.totalorder %s26, 0
      %p194 = por %p192, %p193
      %p195 = scmp.ne.s32.totalorder %s183, %s184
      %p196 = scmp.eq.s32.totalorder %s27, 3
      %p197 = por %p195, %p196
      %p199 = scmp.ne.s32.totalorder %s184, %s198
      %p200 = scmp.eq.s32.totalorder %s27, 0
      %p201 = por %p199, %p200
      %s203 = sadd.s32 %s202, 1
      %p206 = scmp.eq.s32.totalorder %s21, 3
      %p207 = scmp.ne.s32.totalorder %s202, %s204
      %p208 = scmp.eq.s32.totalorder %s21, 0
      %p209 = por %p207, %p208
      %p210 = scmp.ne.s32.totalorder %s202, %s204
      %p211 = scmp.eq.s32.totalorder %s26, 3
      %p212 = por %p210, %p211
      %p213 = scmp.ne.s32.totalorder %s204, %s205
      %p214 = scmp.eq.s32.totalorder %s26, 0
      %p215 = por %p213, %p214
      %p216 = scmp.ne.s32.totalorder %s204, %s205
      %p217 = scmp.eq.s32.totalorder %s27, 3
      %p218 = por %p216, %p217
      %p220 = scmp.ne.s32.totalorder %s205, %s219
      %p221 = scmp.eq.s32.totalorder %s27, 0
      %p222 = por %p220, %p221
      %s223 = ssub.s32 %s21, %s28
      %p224 = scmp.eq.s32.totalorder %s223, 0
      %s226 = sadd.s32 %s225, 1
      %s227 = scalar_select %p224, %s225, %s226
      %p230 = pneg %p224
      %p231 = scmp.eq.s32.totalorder %s21, 3
      %p232 = por %p230, %p231
      %p233 = scmp.ne.s32.totalorder %s225, %s228
      %p234 = scmp.eq.s32.totalorder %s21, 0
      %p235 = por %p233, %p234
      %p236 = scmp.ne.s32.totalorder %s225, %s228
      %p237 = scmp.eq.s32.totalorder %s26, 3
      %p238 = por %p236, %p237
      %p239 = scmp.ne.s32.totalorder %s228, %s229
      %p240 = scmp.eq.s32.totalorder %s26, 0
      %p241 = por %p239, %p240
      %p242 = scmp.ne.s32.totalorder %s228, %s229
      %p243 = scmp.eq.s32.totalorder %s27, 3
      %p244 = por %p242, %p243
      %p246 = scmp.ne.s32.totalorder %s229, %s245
      %p247 = scmp.eq.s32.totalorder %s27, 0
      %p248 = por %p246, %p247
      %p249 = scmp.le.s32.totalorder 1, %s21
      %p250 = scmp.lt.s32.totalorder %s21, 5
      %p251 = pnand %p249, %p250
      %p252 = pneg %p251
      // Predicated region
      $region9: #{tpu_custom_call.1} parent=5 // pred_check
        _
      $region10: #{tpu_custom_call.1} parent=5 // pred_check_branch
        %254 = sbr.rel (%p251) target = $region12
      $region11: #{tpu_custom_call.1} parent=5 // pred_region
        %s255 = ssub.s32 %s21, 1
        // Predicated region
        $region13: #{tpu_custom_call.1} parent=11 // pred_check
          %p256 = pneg %p68
        $region14: #{tpu_custom_call.1} parent=11 // pred_check_branch
          %258 = sbr.rel (%p256) target = $region16
        $region15: #{tpu_custom_call.1} parent=11 // pred_region
          _
        $region16: #{tpu_custom_call.1} parent=11 // pred_fallthru
          _
        // Predicated region
        $region17: #{tpu_custom_call.1} parent=11 // pred_check
          %p259 = pneg %p89
        $region18: #{tpu_custom_call.1} parent=11 // pred_check_branch
          %261 = sbr.rel (%p259) target = $region20
        $region19: #{tpu_custom_call.1} parent=11 // pred_region
          _
        $region20: #{tpu_custom_call.1} parent=11 // pred_fallthru
          _
        // Predicated region
        $region21: #{tpu_custom_call.1} parent=11 // pred_check
          %p262 = pneg %p110
        $region22: #{tpu_custom_call.1} parent=11 // pred_check_branch
          %264 = sbr.rel (%p262) target = $region24
        $region23: #{tpu_custom_call.1} parent=11 // pred_region
          _
        $region24: #{tpu_custom_call.1} parent=11 // pred_fallthru
          _
        // Predicated region
        $region25: #{tpu_custom_call.1} parent=11 // pred_check
          %p265 = pneg %p131
        $region26: #{tpu_custom_call.1} parent=11 // pred_check_branch
          %267 = sbr.rel (%p265) target = $region28
        $region27: #{tpu_custom_call.1} parent=11 // pred_region
          _
        $region28: #{tpu_custom_call.1} parent=11 // pred_fallthru
          _
        // Predicated region
        $region29: #{tpu_custom_call.1} parent=11 // pred_check
          %p268 = pneg %p152
        $region30: #{tpu_custom_call.1} parent=11 // pred_check_branch
          %270 = sbr.rel (%p268) target = $region32
        $region31: #{tpu_custom_call.1} parent=11 // pred_region
          _
        $region32: #{tpu_custom_call.1} parent=11 // pred_fallthru
          _
        // Predicated region
        $region33: #{tpu_custom_call.1} parent=11 // pred_check
          %p271 = pneg %p173
        $region34: #{tpu_custom_call.1} parent=11 // pred_check_branch
          %273 = sbr.rel (%p271) target = $region36
        $region35: #{tpu_custom_call.1} parent=11 // pred_region
          _
        $region36: #{tpu_custom_call.1} parent=11 // pred_fallthru
          _
        // Predicated region
        $region37: #{tpu_custom_call.1} parent=11 // pred_check
          %p274 = pneg %p194
        $region38: #{tpu_custom_call.1} parent=11 // pred_check_branch
          %276 = sbr.rel (%p274) target = $region40
        $region39: #{tpu_custom_call.1} parent=11 // pred_region
          _
        $region40: #{tpu_custom_call.1} parent=11 // pred_fallthru
          _
        // Predicated region
        $region41: #{tpu_custom_call.1} parent=11 // pred_check
          %p277 = pneg %p215
        $region42: #{tpu_custom_call.1} parent=11 // pred_check_branch
          %279 = sbr.rel (%p277) target = $region44
        $region43: #{tpu_custom_call.1} parent=11 // pred_region
          _
        $region44: #{tpu_custom_call.1} parent=11 // pred_fallthru
          _
      $region12: #{tpu_custom_call.1} parent=5 // pred_fallthru
        _
      %p280 = scmp.lt.s32.totalorder %s21, 4
      // Predicated region
      $region45: #{tpu_custom_call.1} parent=5 // pred_check
        %p281 = pneg %p280
      $region46: #{tpu_custom_call.1} parent=5 // pred_check_branch
        %283 = sbr.rel (%p281) target = $region48
      $region47: #{tpu_custom_call.1} parent=5 // pred_region
        // Predicated region
        $region49: #{tpu_custom_call.1} parent=47 // pred_check
          %p284 = pneg %p41
        $region50: #{tpu_custom_call.1} parent=47 // pred_check_branch
          %286 = sbr.rel (%p284) target = $region52
        $region51: #{tpu_custom_call.1} parent=47 // pred_region
          %s287 = sand.u32 %s31, 1
          %s288 = scalar_lea.sflag [#allocation3], %s287
          %s289 = sand.u32 %s31, 1
          %s290 = smul.addr %s289, 64
          %s291 = scalar_lea.vmem [#allocation2], %s290
          %s292 = smul.u32 4, %s21
          %s294 = ssub.s32 1024, 1024
          %295 = vsyncadd %s288, %s294
          %s296 = smul.addr %s292, 128
          %s297 = scalar_lea.hbm %s0, %s296
          %s298 = sshll.u32 %s291, 4
          %s299 = int_to_ptr.vmem [resolvable:$true] %s298
          %304 = dma.hbm_to_vmem [thread:$0]  %s297, 1024, %s299, %s288, 2048, 512, 32
        $region52: #{tpu_custom_call.1} parent=47 // pred_fallthru
          _
      $region48: #{tpu_custom_call.1} parent=5 // pred_fallthru
        _
      %p305 = scmp.le.s32.totalorder 1, %s21
      %p306 = scmp.lt.s32.totalorder %s21, 5
      %p307 = pnand %p305, %p306
      %p308 = pneg %p307
      // Predicated region
      $region53: #{tpu_custom_call.1} parent=5 // pred_check
        _
      $region54: #{tpu_custom_call.1} parent=5 // pred_check_branch
        %310 = sbr.rel (%p307) target = $region56
      $region55: #{tpu_custom_call.1} parent=5 // pred_region
        %s311 = ssub.s32 %s21, 1
        %s312 = sand.u32 %s34, 1
        %s313 = scalar_lea.sflag [#allocation3], %s312
        %s314 = sand.u32 %s34, 1
        %s315 = smul.addr %s314, 64
        %s316 = scalar_lea.vmem [#allocation2], %s315
        // Predicated region
        $region57: #{tpu_custom_call.1} parent=55 // pred_check
          %p317 = pneg %p47
        $region58: #{tpu_custom_call.1} parent=55 // pred_check_branch
          %319 = sbr.rel (%p317) target = $region60
        $region59: #{tpu_custom_call.1} parent=55 // pred_region
          %320 = dma.done %s313, 1024
        $region60: #{tpu_custom_call.1} parent=55 // pred_fallthru
          _
        %s321 = sand.u32 %s34, 1
        %s322 = scalar_lea.sflag [#allocation3], %s321
        %s323 = sand.u32 %s34, 1
        %s324 = smul.addr %s323, 64
        %s325 = scalar_lea.vmem [#allocation2], %s324
        %p326 = pneg %p47
        %p327 = pneg %p44
        %p328 = pneg %p68
        %p329 = pneg %p65
        %p330 = pneg %p89
        %p331 = pneg %p86
        %p332 = pneg %p110
        %p333 = pneg %p107
        %p334 = pneg %p131
        %p335 = pneg %p128
        %p336 = pneg %p152
        %p337 = pneg %p149
        %p338 = pneg %p173
        %p339 = pneg %p170
        %p340 = pneg %p194
        %p341 = pneg %p191
        %p342 = pneg %p215
        %p343 = pneg %p212
        %p344 = pneg %p241
        %p345 = pneg %p238
        %s346 = sand.u32 %s228, 1
        %s347 = scalar_lea.sflag [#allocation4], %s346
        %s348 = sand.u32 %s228, 1
        %s349 = smul.addr %s348, 16
        %s350 = scalar_lea.vmem [#allocation5], %s349
        %s351 = smul.u32 4, %s26
        %s352 = smul.u32 4, %s26
        %v354 = vld [vmem:[%s316] sm:$0xff]
        %v355 = vld [vmem:[%s316 + $0x8] sm:$0xff]
        %v356 = vld [vmem:[%s316 + $0x10] sm:$0xff]
        %v357 = vld [vmem:[%s316 + $0x18] sm:$0xff]
        %v358 = vld [vmem:[%s316 + $0x20] sm:$0xff]
        %v359 = vld [vmem:[%s316 + $0x28] sm:$0xff]
        %v360 = vld [vmem:[%s316 + $0x30] sm:$0xff]
        %v361 = vld [vmem:[%s316 + $0x38] sm:$0xff]
        %v362 = vpack.c.bf16 %v358, %v354
        %v363 = vpack.c.bf16 %v359, %v355
        %v364 = vpack.c.bf16 %v360, %v356
        %v365 = vpack.c.bf16 %v361, %v357
        %v366 = vld [vmem:[%s1] sm:$0xf]
        %v367 = vld [vmem:[%s1 + $0x4] sm:$0xf]
        %v368 = vld [vmem:[%s1 + $0x8] sm:$0xf]
        %v369 = vld [vmem:[%s1 + $0xc] sm:$0xf]
        %v370 = vld [vmem:[%s1 + $0x10] sm:$0xf]
        %v371 = vld [vmem:[%s1 + $0x14] sm:$0xf]
        %v372 = vld [vmem:[%s1 + $0x18] sm:$0xf]
        %v373 = vld [vmem:[%s1 + $0x1c] sm:$0xf]
        %v382 = vunpack.c.l.b16 %v366
        %v383 = vunpack.c.l.b16 %v367
        %v384 = vunpack.c.l.b16 %v368
        %v385 = vunpack.c.l.b16 %v369
        %v386 = vunpack.c.l.b16 %v370
        %v387 = vunpack.c.l.b16 %v371
        %v388 = vunpack.c.l.b16 %v372
        %v389 = vunpack.c.l.b16 %v373
        %v390 = vpack.c.b16 %v383, %v382
        %v391 = vpack.c.b16 %v385, %v384
        %v392 = vpack.c.b16 %v387, %v386
        %v393 = vpack.c.b16 %v389, %v388
        %vm394 = vcmask 130048
        %v396 = vsel %vm394, %v390, 0
        %v399 = vsel %vm394, %v391, 0
        %v402 = vsel %vm394, %v392, 0
        %v405 = vsel %vm394, %v393, 0
        %407 = vmatprep.subr.bf16.mxu0 0
        %408 = vmatpush1.bf16.msra.mxu0 0
        %409 = vmatprep.subr.bf16.mxu0 0
        %410 = vmatpush1.bf16.msra.mxu0 0
        %411 = vmatprep.subr.bf16.mxu0 0
        %412 = vmatpush1.bf16.msra.mxu0 0
        %413 = vmatprep.subr.bf16.mxu0 0
        %414 = vmatpush1.bf16.msra.mxu0 0
        %415 = vmatprep.subr.bf16.mxu0 0
        %416 = vmatpush1.bf16.msra.mxu0 0
        %417 = vmatprep.subr.bf16.mxu0 0
        %418 = vmatpush1.bf16.msra.mxu0 0
        %419 = vmatprep.subr.bf16.mxu0 0
        %420 = vmatpush1.bf16.msra.mxu0 0
        %421 = vmatprep.subr.bf16.mxu0 %v363
        %422 = vmatpush1.bf16.msra.mxu0 %v362
        %423 = vmatprep.subr.bf16.mxu0 0
        %424 = vmatpush2.bf16.msra.mxu0 0
        %425 = vmatprep.subr.bf16.mxu0 0
        %426 = vmatpush2.bf16.msra.mxu0 0
        %427 = vmatprep.subr.bf16.mxu0 0
        %428 = vmatpush2.bf16.msra.mxu0 0
        %429 = vmatprep.subr.bf16.mxu0 0
        %430 = vmatpush2.bf16.msra.mxu0 0
        %431 = vmatprep.subr.bf16.mxu0 0
        %432 = vmatpush2.bf16.msra.mxu0 0
        %433 = vmatprep.subr.bf16.mxu0 0
        %434 = vmatpush2.bf16.msra.mxu0 0
        %435 = vmatprep.subr.bf16.mxu0 0
        %436 = vmatpush2.bf16.msra.mxu0 0
        %437 = vmatprep.subr.bf16.mxu0 0
        %438 = vmatpush2.bf16.msra.mxu0 0
        %439 = vmatprep.mubr.bf16.mxu0 0
        %440 = vmatmul.mubr.bf16.gmra.mxu0 %v396
        %v441 = vpop.f32.mrf.mxu0
        %v442 = vadd.f32 0.0, %v441
        %v443 = vpop.f32.mrf.mxu0
        %v444 = vadd.f32 0.0, %v443
        %v445 = vpop.f32.mrf.mxu0
        %v446 = vadd.f32 0.0, %v445
        %v447 = vpop.f32.mrf.mxu0
        %v448 = vadd.f32 0.0, %v447
        %449 = vmatprep.mubr.bf16.mxu0 0
        %450 = vmatmul.mubr.bf16.gmra.mxu0 %v399
        %v451 = vpop.f32.mrf.mxu0
        %v452 = vadd.f32 0.0, %v451
        %v453 = vpop.f32.mrf.mxu0
        %v454 = vadd.f32 0.0, %v453
        %v455 = vpop.f32.mrf.mxu0
        %v456 = vadd.f32 0.0, %v455
        %v457 = vpop.f32.mrf.mxu0
        %v458 = vadd.f32 0.0, %v457
        %459 = vmatprep.mubr.bf16.mxu0 0
        %460 = vmatmul.mubr.bf16.gmra.mxu0 %v402
        %v461 = vpop.f32.mrf.mxu0
        %v462 = vadd.f32 0.0, %v461
        %v463 = vpop.f32.mrf.mxu0
        %v464 = vadd.f32 0.0, %v463
        %v465 = vpop.f32.mrf.mxu0
        %v466 = vadd.f32 0.0, %v465
        %v467 = vpop.f32.mrf.mxu0
        %v468 = vadd.f32 0.0, %v467
        %469 = vmatprep.mubr.bf16.mxu0 0
        %470 = vmatmul.mubr.bf16.gmra.mxu0 %v405
        %v471 = vpop.f32.mrf.mxu0
        %v472 = vadd.f32 0.0, %v471
        %v473 = vpop.f32.mrf.mxu0
        %v474 = vadd.f32 0.0, %v473
        %v475 = vpop.f32.mrf.mxu0
        %v476 = vadd.f32 0.0, %v475
        %v477 = vpop.f32.mrf.mxu0
        %v478 = vadd.f32 0.0, %v477
        %479 = vdwg.mxu0
        %480 = vmatprep.subr.bf16.mxu0 0
        %481 = vmatpush1.bf16.msra.mxu0 0
        %482 = vmatprep.subr.bf16.mxu0 0
        %483 = vmatpush1.bf16.msra.mxu0 0
        %484 = vmatprep.subr.bf16.mxu0 0
        %485 = vmatpush1.bf16.msra.mxu0 0
        %486 = vmatprep.subr.bf16.mxu0 0
        %487 = vmatpush1.bf16.msra.mxu0 0
        %488 = vmatprep.subr.bf16.mxu0 0
        %489 = vmatpush1.bf16.msra.mxu0 0
        %490 = vmatprep.subr.bf16.mxu0 0
        %491 = vmatpush1.bf16.msra.mxu0 0
        %492 = vmatprep.subr.bf16.mxu0 0
        %493 = vmatpush1.bf16.msra.mxu0 0
        %494 = vmatprep.subr.bf16.mxu0 %v365
        %495 = vmatpush1.bf16.msra.mxu0 %v364
        %496 = vmatprep.subr.bf16.mxu0 0
        %497 = vmatpush2.bf16.msra.mxu0 0
        %498 = vmatprep.subr.bf16.mxu0 0
        %499 = vmatpush2.bf16.msra.mxu0 0
        %500 = vmatprep.subr.bf16.mxu0 0
        %501 = vmatpush2.bf16.msra.mxu0 0
        %502 = vmatprep.subr.bf16.mxu0 0
        %503 = vmatpush2.bf16.msra.mxu0 0
        %504 = vmatprep.subr.bf16.mxu0 0
        %505 = vmatpush2.bf16.msra.mxu0 0
        %506 = vmatprep.subr.bf16.mxu0 0
        %507 = vmatpush2.bf16.msra.mxu0 0
        %508 = vmatprep.subr.bf16.mxu0 0
        %509 = vmatpush2.bf16.msra.mxu0 0
        %510 = vmatprep.subr.bf16.mxu0 0
        %511 = vmatpush2.bf16.msra.mxu0 0
        %512 = vmatprep.mubr.bf16.mxu0 0
        %513 = vmatmul.mubr.bf16.gmra.mxu0 %v396
        %v514 = vpop.f32.mrf.mxu0
        %v515 = vadd.f32 0.0, %v514
        %v516 = vpop.f32.mrf.mxu0
        %v517 = vadd.f32 0.0, %v516
        %v518 = vpop.f32.mrf.mxu0
        %v519 = vadd.f32 0.0, %v518
        %v520 = vpop.f32.mrf.mxu0
        %v521 = vadd.f32 0.0, %v520
        %522 = vmatprep.mubr.bf16.mxu0 0
        %523 = vmatmul.mubr.bf16.gmra.mxu0 %v399
        %v524 = vpop.f32.mrf.mxu0
        %v525 = vadd.f32 0.0, %v524
        %v526 = vpop.f32.mrf.mxu0
        %v527 = vadd.f32 0.0, %v526
        %v528 = vpop.f32.mrf.mxu0
        %v529 = vadd.f32 0.0, %v528
        %v530 = vpop.f32.mrf.mxu0
        %v531 = vadd.f32 0.0, %v530
        %532 = vmatprep.mubr.bf16.mxu0 0
        %533 = vmatmul.mubr.bf16.gmra.mxu0 %v402
        %v534 = vpop.f32.mrf.mxu0
        %v535 = vadd.f32 0.0, %v534
        %v536 = vpop.f32.mrf.mxu0
        %v537 = vadd.f32 0.0, %v536
        %v538 = vpop.f32.mrf.mxu0
        %v539 = vadd.f32 0.0, %v538
        %v540 = vpop.f32.mrf.mxu0
        %v541 = vadd.f32 0.0, %v540
        %542 = vmatprep.mubr.bf16.mxu0 0
        %543 = vmatmul.mubr.bf16.gmra.mxu0 %v405
        %v544 = vpop.f32.mrf.mxu0
        %v545 = vadd.f32 0.0, %v544
        %v546 = vpop.f32.mrf.mxu0
        %v547 = vadd.f32 0.0, %v546
        %v548 = vpop.f32.mrf.mxu0
        %v549 = vadd.f32 0.0, %v548
        %v550 = vpop.f32.mrf.mxu0
        %v551 = vadd.f32 0.0, %v550
        %552 = vdwg.mxu0
        %v553 = vld [vmem:[%s2] sm:$0xff]
        %v554 = vld [vmem:[%s2 + $0x8] sm:$0xff]
        %v555 = vld [vmem:[%s2 + $0x10] sm:$0xff]
        %v556 = vld [vmem:[%s2 + $0x18] sm:$0xff]
        %558 = vset.pattern.permute.xlu0 0
        %559 = vperm.xlu0 %558, %v553
        %v560 = vpop.permute.xlu0 %559
        %563 = vset.pattern.permute.xlu0 0
        %564 = vperm.xlu0 %563, %v554
        %v565 = vpop.permute.xlu0 %564
        %568 = vset.pattern.permute.xlu0 0
        %569 = vperm.xlu0 %568, %v555
        %v570 = vpop.permute.xlu0 %569
        %573 = vset.pattern.permute.xlu0 0
        %574 = vperm.xlu0 %573, %v556
        %v575 = vpop.permute.xlu0 %574
        %v577 = vadd.f32 %v442, %v560
        %v578 = vadd.f32 %v444, %v560
        %v579 = vadd.f32 %v515, %v560
        %v580 = vadd.f32 %v517, %v560
        %v581 = vadd.f32 %v446, %v565
        %v582 = vadd.f32 %v448, %v565
        %v583 = vadd.f32 %v519, %v565
        %v584 = vadd.f32 %v521, %v565
        %v585 = vadd.f32 %v452, %v570
        %v586 = vadd.f32 %v454, %v570
        %v587 = vadd.f32 %v525, %v570
        %v588 = vadd.f32 %v527, %v570
        %v589 = vadd.f32 %v456, %v575
        %v590 = vadd.f32 %v458, %v575
        %v591 = vadd.f32 %v529, %v575
        %v592 = vadd.f32 %v531, %v575
        %v593 = vmax.f32 %v577, 0.0
        %v594 = vmax.f32 %v578, 0.0
        %v595 = vmax.f32 %v579, 0.0
        %v596 = vmax.f32 %v580, 0.0
        %v597 = vmax.f32 %v581, 0.0
        %v598 = vmax.f32 %v582, 0.0
        %v599 = vmax.f32 %v583, 0.0
        %v600 = vmax.f32 %v584, 0.0
        %v601 = vmax.f32 %v585, 0.0
        %v602 = vmax.f32 %v586, 0.0
        %v603 = vmax.f32 %v587, 0.0
        %v604 = vmax.f32 %v588, 0.0
        %v605 = vmax.f32 %v589, 0.0
        %v606 = vmax.f32 %v590, 0.0
        %v607 = vmax.f32 %v591, 0.0
        %v608 = vmax.f32 %v592, 0.0
        %v609 = vld [vmem:[%s3] sm:$0xf]
        %v610 = vld [vmem:[%s3 + $0x4] sm:$0xf]
        %v611 = vpack.c.bf16 %v597, %v593
        %v612 = vpack.c.bf16 %v598, %v594
        %v613 = vpack.c.bf16 %v599, %v595
        %v614 = vpack.c.bf16 %v600, %v596
        %v615 = vpack.c.bf16 %v605, %v601
        %v616 = vpack.c.bf16 %v606, %v602
        %v617 = vpack.c.bf16 %v607, %v603
        %v618 = vpack.c.bf16 %v608, %v604
        %v619 = vld [vmem:[%s4] sm:$0xff]
        %v620 = vld [vmem:[%s4 + $0x8] sm:$0xff]
        %622 = vset.pattern.permute.xlu0 0
        %623 = vperm.xlu0 %622, %v619
        %v624 = vpop.permute.xlu0 %623
        %627 = vset.pattern.permute.xlu0 0
        %628 = vperm.xlu0 %627, %v620
        %v629 = vpop.permute.xlu0 %628
        %v633 = vunpack.c.l.b16 %v609
        %v634 = vunpack.c.l.b16 %v610
        %v635 = vpack.c.b16 %v634, %v633
        %vm636 = vcmask 261120
        %v638 = vsel %vm636, %v635, 0
        %640 = vmatprep.subr.bf16.mxu0 0
        %641 = vmatpush1.bf16.msra.mxu0 0
        %642 = vmatprep.subr.bf16.mxu0 0
        %643 = vmatpush1.bf16.msra.mxu0 0
        %644 = vmatprep.subr.bf16.mxu0 0
        %645 = vmatpush1.bf16.msra.mxu0 0
        %646 = vmatprep.subr.bf16.mxu0 0
        %647 = vmatpush1.bf16.msra.mxu0 0
        %648 = vmatprep.subr.bf16.mxu0 0
        %649 = vmatpush1.bf16.msra.mxu0 0
        %650 = vmatprep.subr.bf16.mxu0 0
        %651 = vmatpush1.bf16.msra.mxu0 0
        %652 = vmatprep.subr.bf16.mxu0 %v616
        %653 = vmatpush1.bf16.msra.mxu0 %v615
        %654 = vmatprep.subr.bf16.mxu0 %v612
        %655 = vmatpush1.bf16.msra.mxu0 %v611
        %656 = vmatprep.subr.bf16.mxu0 0
        %657 = vmatpush2.bf16.msra.mxu0 0
        %658 = vmatprep.subr.bf16.mxu0 0
        %659 = vmatpush2.bf16.msra.mxu0 0
        %660 = vmatprep.subr.bf16.mxu0 0
        %661 = vmatpush2.bf16.msra.mxu0 0
        %662 = vmatprep.subr.bf16.mxu0 0
        %663 = vmatpush2.bf16.msra.mxu0 0
        %664 = vmatprep.subr.bf16.mxu0 0
        %665 = vmatpush2.bf16.msra.mxu0 0
        %666 = vmatprep.subr.bf16.mxu0 0
        %667 = vmatpush2.bf16.msra.mxu0 0
        %668 = vmatprep.subr.bf16.mxu0 0
        %669 = vmatpush2.bf16.msra.mxu0 0
        %670 = vmatprep.subr.bf16.mxu0 0
        %671 = vmatpush2.bf16.msra.mxu0 0
        %672 = vmatprep.mubr.bf16.mxu0 0
        %673 = vmatmul.mubr.bf16.gmra.mxu0 %v638
        %v674 = vpop.f32.mrf.mxu0
        %v675 = vadd.f32 %v624, %v674
        %v676 = vpop.f32.mrf.mxu0
        %v677 = vadd.f32 %v624, %v676
        %v678 = vpop.f32.mrf.mxu0
        %v679 = vadd.f32 %v629, %v678
        %v680 = vpop.f32.mrf.mxu0
        %v681 = vadd.f32 %v629, %v680
        %682 = vdwg.mxu0
        %683 = vmatprep.subr.bf16.mxu0 0
        %684 = vmatpush1.bf16.msra.mxu0 0
        %685 = vmatprep.subr.bf16.mxu0 0
        %686 = vmatpush1.bf16.msra.mxu0 0
        %687 = vmatprep.subr.bf16.mxu0 0
        %688 = vmatpush1.bf16.msra.mxu0 0
        %689 = vmatprep.subr.bf16.mxu0 0
        %690 = vmatpush1.bf16.msra.mxu0 0
        %691 = vmatprep.subr.bf16.mxu0 0
        %692 = vmatpush1.bf16.msra.mxu0 0
        %693 = vmatprep.subr.bf16.mxu0 0
        %694 = vmatpush1.bf16.msra.mxu0 0
        %695 = vmatprep.subr.bf16.mxu0 %v618
        %696 = vmatpush1.bf16.msra.mxu0 %v617
        %697 = vmatprep.subr.bf16.mxu0 %v614
        %698 = vmatpush1.bf16.msra.mxu0 %v613
        %699 = vmatprep.subr.bf16.mxu0 0
        %700 = vmatpush2.bf16.msra.mxu0 0
        %701 = vmatprep.subr.bf16.mxu0 0
        %702 = vmatpush2.bf16.msra.mxu0 0
        %703 = vmatprep.subr.bf16.mxu0 0
        %704 = vmatpush2.bf16.msra.mxu0 0
        %705 = vmatprep.subr.bf16.mxu0 0
        %706 = vmatpush2.bf16.msra.mxu0 0
        %707 = vmatprep.subr.bf16.mxu0 0
        %708 = vmatpush2.bf16.msra.mxu0 0
        %709 = vmatprep.subr.bf16.mxu0 0
        %710 = vmatpush2.bf16.msra.mxu0 0
        %711 = vmatprep.subr.bf16.mxu0 0
        %712 = vmatpush2.bf16.msra.mxu0 0
        %713 = vmatprep.subr.bf16.mxu0 0
        %714 = vmatpush2.bf16.msra.mxu0 0
        %715 = vmatprep.mubr.bf16.mxu0 0
        %716 = vmatmul.mubr.bf16.gmra.mxu0 %v638
        %v717 = vpop.f32.mrf.mxu0
        %v718 = vadd.f32 %v624, %v717
        %v719 = vpop.f32.mrf.mxu0
        %v720 = vadd.f32 %v624, %v719
        %v721 = vpop.f32.mrf.mxu0
        %v722 = vadd.f32 %v629, %v721
        %v723 = vpop.f32.mrf.mxu0
        %v724 = vadd.f32 %v629, %v723
        %725 = vdwg.mxu0
        %v726 = vmax.f32 %v675, 0.0
        %v727 = vmax.f32 %v677, 0.0
        %v728 = vmax.f32 %v718, 0.0
        %v729 = vmax.f32 %v720, 0.0
        %v730 = vmax.f32 %v679, 0.0
        %v731 = vmax.f32 %v681, 0.0
        %v732 = vmax.f32 %v722, 0.0
        %v733 = vmax.f32 %v724, 0.0
        %v734 = vld [vmem:[%s5] sm:$0xf]
        %v735 = vld [vmem:[%s5 + $0x4] sm:$0xf]
        %v736 = vld [vmem:[%s5 + $0x8] sm:$0xf]
        %v737 = vld [vmem:[%s5 + $0xc] sm:$0xf]
        %v738 = vpack.c.bf16 %v730, %v726
        %v739 = vpack.c.bf16 %v731, %v727
        %v740 = vpack.c.bf16 %v732, %v728
        %v741 = vpack.c.bf16 %v733, %v729
        %v746 = vunpack.c.l.b16 %v734
        %v747 = vunpack.c.l.b16 %v735
        %v748 = vunpack.c.l.b16 %v736
        %v749 = vunpack.c.l.b16 %v737
        %v750 = vpack.c.b16 %v747, %v746
        %v751 = vpack.c.b16 %v749, %v748
        %v753 = vsel %vm394, %v750, 0
        %v756 = vsel %vm394, %v751, 0
        %758 = vmatprep.subr.bf16.mxu0 0
        %759 = vmatpush1.bf16.msra.mxu0 0
        %760 = vmatprep.subr.bf16.mxu0 0
        %761 = vmatpush1.bf16.msra.mxu0 0
        %762 = vmatprep.subr.bf16.mxu0 0
        %763 = vmatpush1.bf16.msra.mxu0 0
        %764 = vmatprep.subr.bf16.mxu0 0
        %765 = vmatpush1.bf16.msra.mxu0 0
        %766 = vmatprep.subr.bf16.mxu0 0
        %767 = vmatpush1.bf16.msra.mxu0 0
        %768 = vmatprep.subr.bf16.mxu0 0
        %769 = vmatpush1.bf16.msra.mxu0 0
        %770 = vmatprep.subr.bf16.mxu0 0
        %771 = vmatpush1.bf16.msra.mxu0 0
        %772 = vmatprep.subr.bf16.mxu0 %v739
        %773 = vmatpush1.bf16.msra.mxu0 %v738
        %774 = vmatprep.subr.bf16.mxu0 0
        %775 = vmatpush2.bf16.msra.mxu0 0
        %776 = vmatprep.subr.bf16.mxu0 0
        %777 = vmatpush2.bf16.msra.mxu0 0
        %778 = vmatprep.subr.bf16.mxu0 0
        %779 = vmatpush2.bf16.msra.mxu0 0
        %780 = vmatprep.subr.bf16.mxu0 0
        %781 = vmatpush2.bf16.msra.mxu0 0
        %782 = vmatprep.subr.bf16.mxu0 0
        %783 = vmatpush2.bf16.msra.mxu0 0
        %784 = vmatprep.subr.bf16.mxu0 0
        %785 = vmatpush2.bf16.msra.mxu0 0
        %786 = vmatprep.subr.bf16.mxu0 0
        %787 = vmatpush2.bf16.msra.mxu0 0
        %788 = vmatprep.subr.bf16.mxu0 0
        %789 = vmatpush2.bf16.msra.mxu0 0
        %790 = vmatprep.mubr.bf16.mxu0 0
        %791 = vmatmul.mubr.bf16.gmra.mxu0 %v753
        %v792 = vpop.f32.mrf.mxu0
        %v793 = vadd.f32 %v462, %v792
        %v794 = vpop.f32.mrf.mxu0
        %v795 = vadd.f32 %v464, %v794
        %v796 = vpop.f32.mrf.mxu0
        %v797 = vadd.f32 %v466, %v796
        %v798 = vpop.f32.mrf.mxu0
        %v799 = vadd.f32 %v468, %v798
        %800 = vmatprep.mubr.bf16.mxu0 0
        %801 = vmatmul.mubr.bf16.gmra.mxu0 %v756
        %v802 = vpop.f32.mrf.mxu0
        %v803 = vadd.f32 %v472, %v802
        %v804 = vpop.f32.mrf.mxu0
        %v805 = vadd.f32 %v474, %v804
        %v806 = vpop.f32.mrf.mxu0
        %v807 = vadd.f32 %v476, %v806
        %v808 = vpop.f32.mrf.mxu0
        %v809 = vadd.f32 %v478, %v808
        %810 = vdwg.mxu0
        %811 = vmatprep.subr.bf16.mxu0 0
        %812 = vmatpush1.bf16.msra.mxu0 0
        %813 = vmatprep.subr.bf16.mxu0 0
        %814 = vmatpush1.bf16.msra.mxu0 0
        %815 = vmatprep.subr.bf16.mxu0 0
        %816 = vmatpush1.bf16.msra.mxu0 0
        %817 = vmatprep.subr.bf16.mxu0 0
        %818 = vmatpush1.bf16.msra.mxu0 0
        %819 = vmatprep.subr.bf16.mxu0 0
        %820 = vmatpush1.bf16.msra.mxu0 0
        %821 = vmatprep.subr.bf16.mxu0 0
        %822 = vmatpush1.bf16.msra.mxu0 0
        %823 = vmatprep.subr.bf16.mxu0 0
        %824 = vmatpush1.bf16.msra.mxu0 0
        %825 = vmatprep.subr.bf16.mxu0 %v741
        %826 = vmatpush1.bf16.msra.mxu0 %v740
        %827 = vmatprep.subr.bf16.mxu0 0
        %828 = vmatpush2.bf16.msra.mxu0 0
        %829 = vmatprep.subr.bf16.mxu0 0
        %830 = vmatpush2.bf16.msra.mxu0 0
        %831 = vmatprep.subr.bf16.mxu0 0
        %832 = vmatpush2.bf16.msra.mxu0 0
        %833 = vmatprep.subr.bf16.mxu0 0
        %834 = vmatpush2.bf16.msra.mxu0 0
        %835 = vmatprep.subr.bf16.mxu0 0
        %836 = vmatpush2.bf16.msra.mxu0 0
        %837 = vmatprep.subr.bf16.mxu0 0
        %838 = vmatpush2.bf16.msra.mxu0 0
        %839 = vmatprep.subr.bf16.mxu0 0
        %840 = vmatpush2.bf16.msra.mxu0 0
        %841 = vmatprep.subr.bf16.mxu0 0
        %842 = vmatpush2.bf16.msra.mxu0 0
        %843 = vmatprep.mubr.bf16.mxu0 0
        %844 = vmatmul.mubr.bf16.gmra.mxu0 %v753
        %v845 = vpop.f32.mrf.mxu0
        %v846 = vadd.f32 %v535, %v845
        %v847 = vpop.f32.mrf.mxu0
        %v848 = vadd.f32 %v537, %v847
        %v849 = vpop.f32.mrf.mxu0
        %v850 = vadd.f32 %v539, %v849
        %v851 = vpop.f32.mrf.mxu0
        %v852 = vadd.f32 %v541, %v851
        %853 = vmatprep.mubr.bf16.mxu0 0
        %854 = vmatmul.mubr.bf16.gmra.mxu0 %v756
        %v855 = vpop.f32.mrf.mxu0
        %v856 = vadd.f32 %v545, %v855
        %v857 = vpop.f32.mrf.mxu0
        %v858 = vadd.f32 %v547, %v857
        %v859 = vpop.f32.mrf.mxu0
        %v860 = vadd.f32 %v549, %v859
        %v861 = vpop.f32.mrf.mxu0
        %v862 = vadd.f32 %v551, %v861
        %863 = vdwg.mxu0
        %v864 = vld [vmem:[%s6] sm:$0xff]
        %v865 = vld [vmem:[%s6 + $0x8] sm:$0xff]
        %v866 = vld [vmem:[%s6 + $0x10] sm:$0xff]
        %v867 = vld [vmem:[%s6 + $0x18] sm:$0xff]
        %869 = vset.pattern.permute.xlu0 0
        %870 = vperm.xlu0 %869, %v864
        %v871 = vpop.permute.xlu0 %870
        %874 = vset.pattern.permute.xlu0 0
        %875 = vperm.xlu0 %874, %v865
        %v876 = vpop.permute.xlu0 %875
        %879 = vset.pattern.permute.xlu0 0
        %880 = vperm.xlu0 %879, %v866
        %v881 = vpop.permute.xlu0 %880
        %884 = vset.pattern.permute.xlu0 0
        %885 = vperm.xlu0 %884, %v867
        %v886 = vpop.permute.xlu0 %885
        %v888 = vadd.f32 %v793, %v871
        %v889 = vadd.f32 %v795, %v871
        %v890 = vadd.f32 %v846, %v871
        %v891 = vadd.f32 %v848, %v871
        %v892 = vadd.f32 %v797, %v876
        %v893 = vadd.f32 %v799, %v876
        %v894 = vadd.f32 %v850, %v876
        %v895 = vadd.f32 %v852, %v876
        %v896 = vadd.f32 %v803, %v881
        %v897 = vadd.f32 %v805, %v881
        %v898 = vadd.f32 %v856, %v881
        %v899 = vadd.f32 %v858, %v881
        %v900 = vadd.f32 %v807, %v886
        %v901 = vadd.f32 %v809, %v886
        %v902 = vadd.f32 %v860, %v886
        %v903 = vadd.f32 %v862, %v886
        %v904 = vmax.f32 %v888, 0.0
        %v905 = vmax.f32 %v889, 0.0
        %v906 = vmax.f32 %v890, 0.0
        %v907 = vmax.f32 %v891, 0.0
        %v908 = vmax.f32 %v892, 0.0
        %v909 = vmax.f32 %v893, 0.0
        %v910 = vmax.f32 %v894, 0.0
        %v911 = vmax.f32 %v895, 0.0
        %v912 = vmax.f32 %v896, 0.0
        %v913 = vmax.f32 %v897, 0.0
        %v914 = vmax.f32 %v898, 0.0
        %v915 = vmax.f32 %v899, 0.0
        %v916 = vmax.f32 %v900, 0.0
        %v917 = vmax.f32 %v901, 0.0
        %v918 = vmax.f32 %v902, 0.0
        %v919 = vmax.f32 %v903, 0.0
        %v920 = vld [vmem:[%s7] sm:$0x3]
        %v921 = vpack.c.bf16 %v908, %v904
        %v922 = vpack.c.bf16 %v909, %v905
        %v923 = vpack.c.bf16 %v910, %v906
        %v924 = vpack.c.bf16 %v911, %v907
        %v925 = vpack.c.bf16 %v916, %v912
        %v926 = vpack.c.bf16 %v917, %v913
        %v927 = vpack.c.bf16 %v918, %v914
        %v928 = vpack.c.bf16 %v919, %v915
        %v929 = vld [vmem:[%s8] sm:$0x7]
        %931 = vset.pattern.permute.xlu0 0
        %932 = vperm.xlu0 %931, %v929
        %v933 = vpop.permute.xlu0 %932
        %v936 = vsel %vm636, %v920, 0
        %938 = vmatprep.subr.bf16.mxu0 0
        %939 = vmatpush1.bf16.msra.mxu0 0
        %940 = vmatprep.subr.bf16.mxu0 0
        %941 = vmatpush1.bf16.msra.mxu0 0
        %942 = vmatprep.subr.bf16.mxu0 0
        %943 = vmatpush1.bf16.msra.mxu0 0
        %944 = vmatprep.subr.bf16.mxu0 0
        %945 = vmatpush1.bf16.msra.mxu0 0
        %946 = vmatprep.subr.bf16.mxu0 0
        %947 = vmatpush1.bf16.msra.mxu0 0
        %948 = vmatprep.subr.bf16.mxu0 0
        %949 = vmatpush1.bf16.msra.mxu0 0
        %950 = vmatprep.subr.bf16.mxu0 %v926
        %951 = vmatpush1.bf16.msra.mxu0 %v925
        %952 = vmatprep.subr.bf16.mxu0 %v922
        %953 = vmatpush1.bf16.msra.mxu0 %v921
        %954 = vmatprep.subr.bf16.mxu0 0
        %955 = vmatpush2.bf16.msra.mxu0 0
        %956 = vmatprep.subr.bf16.mxu0 0
        %957 = vmatpush2.bf16.msra.mxu0 0
        %958 = vmatprep.subr.bf16.mxu0 0
        %959 = vmatpush2.bf16.msra.mxu0 0
        %960 = vmatprep.subr.bf16.mxu0 0
        %961 = vmatpush2.bf16.msra.mxu0 0
        %962 = vmatprep.subr.bf16.mxu0 0
        %963 = vmatpush2.bf16.msra.mxu0 0
        %964 = vmatprep.subr.bf16.mxu0 0
        %965 = vmatpush2.bf16.msra.mxu0 0
        %966 = vmatprep.subr.bf16.mxu0 0
        %967 = vmatpush2.bf16.msra.mxu0 0
        %968 = vmatprep.subr.bf16.mxu0 0
        %969 = vmatpush2.bf16.msra.mxu0 0
        %970 = vmatprep.mubr.bf16.mxu0 0
        %971 = vmatmul.mubr.bf16.gmra.mxu0 %v936
        %v972 = vpop.f32.mrf.mxu0
        %v973 = vadd.f32 %v933, %v972
        %v974 = vpop.f32.mrf.mxu0
        %v975 = vadd.f32 %v933, %v974
        %v976 = vpop.f32.mrf.mxu0
        %v977 = vpop.f32.mrf.mxu0
        %978 = vdwg.mxu0
        %979 = vmatprep.subr.bf16.mxu0 0
        %980 = vmatpush1.bf16.msra.mxu0 0
        %981 = vmatprep.subr.bf16.mxu0 0
        %982 = vmatpush1.bf16.msra.mxu0 0
        %983 = vmatprep.subr.bf16.mxu0 0
        %984 = vmatpush1.bf16.msra.mxu0 0
        %985 = vmatprep.subr.bf16.mxu0 0
        %986 = vmatpush1.bf16.msra.mxu0 0
        %987 = vmatprep.subr.bf16.mxu0 0
        %988 = vmatpush1.bf16.msra.mxu0 0
        %989 = vmatprep.subr.bf16.mxu0 0
        %990 = vmatpush1.bf16.msra.mxu0 0
        %991 = vmatprep.subr.bf16.mxu0 %v928
        %992 = vmatpush1.bf16.msra.mxu0 %v927
        %993 = vmatprep.subr.bf16.mxu0 %v924
        %994 = vmatpush1.bf16.msra.mxu0 %v923
        %995 = vmatprep.subr.bf16.mxu0 0
        %996 = vmatpush2.bf16.msra.mxu0 0
        %997 = vmatprep.subr.bf16.mxu0 0
        %998 = vmatpush2.bf16.msra.mxu0 0
        %999 = vmatprep.subr.bf16.mxu0 0
        %1000 = vmatpush2.bf16.msra.mxu0 0
        %1001 = vmatprep.subr.bf16.mxu0 0
        %1002 = vmatpush2.bf16.msra.mxu0 0
        %1003 = vmatprep.subr.bf16.mxu0 0
        %1004 = vmatpush2.bf16.msra.mxu0 0
        %1005 = vmatprep.subr.bf16.mxu0 0
        %1006 = vmatpush2.bf16.msra.mxu0 0
        %1007 = vmatprep.subr.bf16.mxu0 0
        %1008 = vmatpush2.bf16.msra.mxu0 0
        %1009 = vmatprep.subr.bf16.mxu0 0
        %1010 = vmatpush2.bf16.msra.mxu0 0
        %1011 = vmatprep.mubr.bf16.mxu0 0
        %1012 = vmatmul.mubr.bf16.gmra.mxu0 %v936
        %v1013 = vpop.f32.mrf.mxu0
        %v1014 = vadd.f32 %v933, %v1013
        %v1015 = vpop.f32.mrf.mxu0
        %v1016 = vadd.f32 %v933, %v1015
        %v1017 = vpop.f32.mrf.mxu0
        %v1018 = vpop.f32.mrf.mxu0
        %1019 = vdwg.mxu0
        %v1020 = vtanh.pop %v973
        %v1021 = vtanh.pop %v975
        %v1022 = vtanh.pop %v1014
        %v1023 = vtanh.pop %v1016
        %v1028 = vcombine.low %v1020, %v1021
        %v1029 = vcombine.low %v1022, %v1023
        %1032 = vst [vmem:[%s350] sm:$0x77] %v1028
        %1033 = vst [vmem:[%s350 + $0x8] sm:$0x77] %v1029
        %s1034 = sand.u32 %s228, 1
        %s1035 = scalar_lea.sflag [#allocation4], %s1034
        %s1036 = sand.u32 %s228, 1
        %s1037 = smul.addr %s1036, 16
        %s1038 = scalar_lea.vmem [#allocation5], %s1037
        // Predicated region
        $region61: #{tpu_custom_call.1} parent=55 // pred_check
          %p1039 = pneg %p238
        $region62: #{tpu_custom_call.1} parent=55 // pred_check_branch
          %1041 = sbr.rel (%p1039) target = $region64
        $region63: #{tpu_custom_call.1} parent=55 // pred_region
          %s1042 = smul.u32 4, %s26
          %s1044 = ssub.s32 256, 256
          %1045 = vsyncadd %s1035, %s1044
          %s1046 = smul.addr %s1042, 64
          %s1047 = scalar_lea.hbm %s9, %s1046
          %s1049 = sshll.u32 %s1038, 4
          %s1050 = int_to_ptr.vmem [resolvable:$true] %s1049
          %1052 = dma.vmem_to_hbm [thread:$0]  %s1050, 256, %s1047, %s1035
        $region64: #{tpu_custom_call.1} parent=55 // pred_fallthru
          _
      $region56: #{tpu_custom_call.1} parent=5 // pred_fallthru
        _
      %p1053 = scmp.le.s32.totalorder 2, %s21
      // Predicated region
      $region65: #{tpu_custom_call.1} parent=5 // pred_check
        %p1054 = pneg %p1053
      $region66: #{tpu_custom_call.1} parent=5 // pred_check_branch
        %1056 = sbr.rel (%p1054) target = $region68
      $region67: #{tpu_custom_call.1} parent=5 // pred_region
        %s1057 = ssub.s32 %s21, 2
        // Predicated region
        $region69: #{tpu_custom_call.1} parent=67 // pred_check
          %p1058 = pneg %p244
        $region70: #{tpu_custom_call.1} parent=67 // pred_check_branch
          %1060 = sbr.rel (%p1058) target = $region72
        $region71: #{tpu_custom_call.1} parent=67 // pred_region
          %s1061 = sand.u32 %s229, 1
          %s1062 = scalar_lea.sflag [#allocation4], %s1061
          %s1063 = sand.u32 %s229, 1
          %s1064 = smul.addr %s1063, 16
          %s1065 = scalar_lea.vmem [#allocation5], %s1064
          %1066 = dma.done %s1062, 256
        $region72: #{tpu_custom_call.1} parent=67 // pred_fallthru
          _
      $region68: #{tpu_custom_call.1} parent=5 // pred_fallthru
        _
    $region6: #{tpu_custom_call.1} parent=1 // loop_footer
      %s25 = sadd.s32 1, %s21
    $region7: #{tpu_custom_call.1} parent=1 // loop_footer_branch
      %20 = sbr.rel target = $region3
    $region8: #{tpu_custom_call.1} parent=1 // loop_exit
      _
    %1067 = vsyncpa [#allocation3], 1
    %s1068 = scalar_lea.sflag [#allocation3], 1
    %1069 = vsyncpa %s1068, 1
    %1070 = vsyncpa [#allocation4], 1
    %s1071 = scalar_lea.sflag [#allocation4], 1
    %1072 = vsyncpa %s1071, 1

</llo_original>
